<compile_context>
chip_gen: v6e
topology: v6e:2x2x1
jax: 0.10.0
libtpu: 0.0.40
codegen_flags: <defaults>
</compile_context>

<pallas_src>
import functools

import jax
import jax.numpy as jnp
from jax.experimental import pallas as pl
from jax.experimental.pallas import tpu as pltpu

NEG_SLOPE = 0.01   # PyTorch nn.LeakyReLU default negative_slope
HIDDEN = 5
VMEM_BUDGET_BYTES = 6 * 1024 * 1024   # per-step budget, safe on v5e's 16 MiB scoped VMEM


def _leaky_relu(h):
    # Exact match to LeakyReLU(0.01) because 0 < slope < 1.
    return jnp.maximum(h, NEG_SLOPE * h)


def mlp_kernel(p_ref, x_ref, o_ref, *, layer_specs):
    """4-layer MLP + sigmoid on one sublane-packed, lane-dense batch tile.

    p_ref : SMEM (P,) f32            -- all weights & biases packed flat
    x_ref : VMEM (in, 8, TB) f32     -- features leading, batch packed as (8, TB)
    o_ref : VMEM (8, TB) f32         -- sigmoid output, fully dense store
    layer_specs : static tuple of (w_off, b_off, k_in, n_out, apply_leaky)
    """
    k0 = layer_specs[0][2]
    # Each row is a full (8, TB) tile -> all 8 sublanes of every vreg are used.
    rows = [x_ref[k] for k in range(k0)]

    for (w_off, b_off, k_in, n_out, leaky) in layer_specs:
        new_rows = []
        for n in range(n_out):
            base = w_off + n * k_in
            # Unrolled rank-1 (scalar * tile) accumulation on the VPU; weights
            # come from SMEM as scalars (cheap sld), no MXU push/drain.
            acc = rows[0] * p_ref[base]
            for k in range(1, k_in):
                acc = acc + rows[k] * p_ref[base + k]
            acc = acc + p_ref[b_off + n]
            if leaky:
                acc = _leaky_relu(acc)
            new_rows.append(acc)
        rows = new_rows

    # Final layer has a single output feature; sigmoid goes through the EUP.
    o_ref[...] = jax.nn.sigmoid(rows[0])


def pack_params(params):
    """Flatten [(W, b)] * L (PyTorch layout: W (out, in), b (out,)) into one
    1-D f32 buffer for SMEM, and record static offsets for the kernel."""
    chunks = []
    specs = []
    off = 0
    n_layers = len(params)
    for li, (w, b) in enumerate(params):
        n_out, k_in = w.shape
        w_off = off
        chunks.append(jnp.asarray(w, jnp.float32).reshape(-1))
        off += w.size
        b_off = off
        chunks.append(jnp.asarray(b, jnp.float32).reshape(-1))
        off += b.size
        specs.append((w_off, b_off, k_in, n_out, li < n_layers - 1))
    flat = jnp.concatenate(chunks)
    pad = pl.cdiv(off, 128) * 128
    packed = jnp.zeros((pad,), jnp.float32).at[:off].set(flat)
    return packed, tuple(specs)


def build_forward(params, *, block_lanes=16 * 1024):
    """Pack parameters once (hoisted out of the per-call path) and return a
    jitted forward: x (B, input_size) f32 -> (B, 1) f32."""
    packed, layer_specs = pack_params(params)
    input_size = layer_specs[0][2]
    kernel = functools.partial(mlp_kernel, layer_specs=layer_specs)

    @jax.jit
    def forward(x):
        batch = x.shape[0]
        assert x.shape[1] == input_size

        # ---- tile sizing (lanes = packed batch columns, 8 samples per lane) ----
        lanes = pl.cdiv(batch, 8)
        lanes_pad = pl.cdiv(lanes, 128) * 128
        # VMEM cap: double-buffered input block + output block per step.
        bytes_per_lane = (input_size * 8 + 8) * 4 * 2
        max_tb = max(128, (VMEM_BUDGET_BYTES // bytes_per_lane) // 128 * 128)
        tb = min(block_lanes, max_tb, lanes_pad)
        # Keep >= 2 grid steps when possible so v7x's 2nd TensorCore gets work.
        if lanes_pad >= 2 * 128 and tb > lanes_pad // 2:
            tb = max(128, (lanes_pad // 2) // 128 * 128)
        lanes_pad = pl.cdiv(lanes_pad, tb) * tb
        b_pad = 8 * lanes_pad

        # ---- layout: (B, in) -> (in, 8, lanes_pad); only the batch is padded ----
        xt = x.T.astype(jnp.float32)                       # (in, B)
        if b_pad > batch:
            xt = jnp.pad(xt, ((0, 0), (0, b_pad - batch)))
        xt = xt.reshape(input_size, 8, lanes_pad)          # free row-major reshape

        out = pl.pallas_call(
            kernel,
            out_shape=jax.ShapeDtypeStruct((8, lanes_pad), jnp.float32),
            grid=(lanes_pad // tb,),
            in_specs=[
                # All parameters in one small resident SMEM buffer (not blocked).
                pl.BlockSpec(memory_space=pltpu.MemorySpace.SMEM),
                # Sublane-packed, lane-dense activation tile (double-buffered).
                pl.BlockSpec((input_size, 8, tb), lambda i: (0, 0, i)),
            ],
            out_specs=pl.BlockSpec((8, tb), lambda i: (0, i)),
            compiler_params=pltpu.CompilerParams(
                # Batch tiles are independent -> shard across TensorCores on v7x.
                dimension_semantics=("parallel",),
            ),
        )(packed, xt)

        # (8, lanes_pad) -> (b_pad,) -> drop padding -> (B, 1)
        return out.reshape(b_pad)[:batch].reshape(batch, 1)

    return forward


def init_params(key, input_size):
    """PyTorch nn.Linear default init: U(-1/sqrt(fan_in), 1/sqrt(fan_in))."""
    dims = [(HIDDEN, input_size), (HIDDEN, HIDDEN), (HIDDEN, HIDDEN), (1, HIDDEN)]
    params = []
    for (fan_out, fan_in) in dims:
        key, kw, kb = jax.random.split(key, 3)
        bound = 1.0 / float(fan_in) ** 0.5
        w = jax.random.uniform(kw, (fan_out, fan_in), jnp.float32, -bound, bound)
        b = jax.random.uniform(kb, (fan_out,), jnp.float32, -bound, bound)
        params.append((w, b))
    return params


def reference_forward(x, params):
    """Pure-JAX reference mirroring the PyTorch module (x @ W.T + b)."""
    h = x
    for i, (w, b) in enumerate(params):
        h = h @ w.T + b
        if i < len(params) - 1:
            h = jnp.where(h >= 0, h, NEG_SLOPE * h)
    return jax.nn.sigmoid(h)


if __name__ == "__main__":
    key = jax.random.PRNGKey(0)
    input_size = 2   # helloXor: pairs of bits
    batch = 8

    k_x, k_p = jax.random.split(key)
    x = (jax.random.uniform(k_x, (batch, input_size)) > 0.5).astype(jnp.float32)
    params = init_params(k_p, input_size)

    forward = build_forward(params)

    out = jax.block_until_ready(forward(x))
    ref = reference_forward(x, params)
    assert out.shape == (batch, 1), out.shape
    assert jnp.allclose(out, ref, atol=1e-5, rtol=1e-5), (out, ref)

    # Exercise batch padding + multi-step grid path as well.
    k_x2, _ = jax.random.split(k_x)
    x2 = (jax.random.uniform(k_x2, (3000, input_size)) > 0.5).astype(jnp.float32)
    out2 = jax.block_until_ready(forward(x2))
    ref2 = reference_forward(x2, params)
    assert out2.shape == (3000, 1), out2.shape
    assert jnp.allclose(out2, ref2, atol=1e-5, rtol=1e-5)

    print("KERNEL_OK")
</pallas_src>

<mosaic_0001>
module attributes {stable_mosaic.version = 11 : i64} {
  func.func @mlp_kernel(%arg0: i32, %arg1: memref<128xf32, #tpu.memory_space<smem>>, %arg2: memref<2x8x128xf32, #tpu.memory_space<vmem>>, %arg3: memref<8x128xf32, #tpu.memory_space<vmem>>) attributes {dimension_semantics = [#tpu.dimension_semantics<parallel>], iteration_bounds = array<i64: 1>, scalar_prefetch = 0 : i64, scratch_operands = 0 : i64, tpu.core_type = #tpu.core_type<tc>, window_params = [{transform_indices = @transform_0, window_bounds = array<i64: 128>}, {transform_indices = @transform_1, window_bounds = array<i64: 2, 8, 128>}, {transform_indices = @transform_2, window_bounds = array<i64: 8, 128>}]} {
    %c0 = arith.constant 0 : index
    %c0_0 = arith.constant 0 : index
    %c0_1 = arith.constant 0 : index
    %0 = vector.load %arg2[%c0, %c0_0, %c0_1] : memref<2x8x128xf32, #tpu.memory_space<vmem>>, vector<1x8x128xf32>
    %1 = vector.shape_cast %0 : vector<1x8x128xf32> to vector<8x128xf32>
    %c1 = arith.constant 1 : index
    %c0_2 = arith.constant 0 : index
    %c0_3 = arith.constant 0 : index
    %2 = vector.load %arg2[%c1, %c0_2, %c0_3] : memref<2x8x128xf32, #tpu.memory_space<vmem>>, vector<1x8x128xf32>
    %3 = vector.shape_cast %2 : vector<1x8x128xf32> to vector<8x128xf32>
    %c0_4 = arith.constant 0 : index
    %4 = memref.load %arg1[%c0_4] : memref<128xf32, #tpu.memory_space<smem>>
    %5 = vector.broadcast %4 : f32 to vector<8x128xf32>
    %6 = arith.mulf %1, %5 : vector<8x128xf32>
    %c1_5 = arith.constant 1 : index
    %7 = memref.load %arg1[%c1_5] : memref<128xf32, #tpu.memory_space<smem>>
    %8 = vector.broadcast %7 : f32 to vector<8x128xf32>
    %9 = arith.mulf %3, %8 : vector<8x128xf32>
    %10 = arith.addf %6, %9 : vector<8x128xf32>
    %c10 = arith.constant 10 : index
    %11 = memref.load %arg1[%c10] : memref<128xf32, #tpu.memory_space<smem>>
    %12 = vector.broadcast %11 : f32 to vector<8x128xf32>
    %13 = arith.addf %10, %12 : vector<8x128xf32>
    %cst = arith.constant 0.00999999977 : f32
    %14 = vector.broadcast %cst : f32 to vector<8x128xf32>
    %15 = arith.mulf %14, %13 : vector<8x128xf32>
    %16 = arith.maximumf %13, %15 : vector<8x128xf32>
    %c2 = arith.constant 2 : index
    %17 = memref.load %arg1[%c2] : memref<128xf32, #tpu.memory_space<smem>>
    %18 = vector.broadcast %17 : f32 to vector<8x128xf32>
    %19 = arith.mulf %1, %18 : vector<8x128xf32>
    %c3 = arith.constant 3 : index
    %20 = memref.load %arg1[%c3] : memref<128xf32, #tpu.memory_space<smem>>
    %21 = vector.broadcast %20 : f32 to vector<8x128xf32>
    %22 = arith.mulf %3, %21 : vector<8x128xf32>
    %23 = arith.addf %19, %22 : vector<8x128xf32>
    %c11 = arith.constant 11 : index
    %24 = memref.load %arg1[%c11] : memref<128xf32, #tpu.memory_space<smem>>
    %25 = vector.broadcast %24 : f32 to vector<8x128xf32>
    %26 = arith.addf %23, %25 : vector<8x128xf32>
    %cst_6 = arith.constant 0.00999999977 : f32
    %27 = vector.broadcast %cst_6 : f32 to vector<8x128xf32>
    %28 = arith.mulf %27, %26 : vector<8x128xf32>
    %29 = arith.maximumf %26, %28 : vector<8x128xf32>
    %c4 = arith.constant 4 : index
    %30 = memref.load %arg1[%c4] : memref<128xf32, #tpu.memory_space<smem>>
    %31 = vector.broadcast %30 : f32 to vector<8x128xf32>
    %32 = arith.mulf %1, %31 : vector<8x128xf32>
    %c5 = arith.constant 5 : index
    %33 = memref.load %arg1[%c5] : memref<128xf32, #tpu.memory_space<smem>>
    %34 = vector.broadcast %33 : f32 to vector<8x128xf32>
    %35 = arith.mulf %3, %34 : vector<8x128xf32>
    %36 = arith.addf %32, %35 : vector<8x128xf32>
    %c12 = arith.constant 12 : index
    %37 = memref.load %arg1[%c12] : memref<128xf32, #tpu.memory_space<smem>>
    %38 = vector.broadcast %37 : f32 to vector<8x128xf32>
    %39 = arith.addf %36, %38 : vector<8x128xf32>
    %cst_7 = arith.constant 0.00999999977 : f32
    %40 = vector.broadcast %cst_7 : f32 to vector<8x128xf32>
    %41 = arith.mulf %40, %39 : vector<8x128xf32>
    %42 = arith.maximumf %39, %41 : vector<8x128xf32>
    %c6 = arith.constant 6 : index
    %43 = memref.load %arg1[%c6] : memref<128xf32, #tpu.memory_space<smem>>
    %44 = vector.broadcast %43 : f32 to vector<8x128xf32>
    %45 = arith.mulf %1, %44 : vector<8x128xf32>
    %c7 = arith.constant 7 : index
    %46 = memref.load %arg1[%c7] : memref<128xf32, #tpu.memory_space<smem>>
    %47 = vector.broadcast %46 : f32 to vector<8x128xf32>
    %48 = arith.mulf %3, %47 : vector<8x128xf32>
    %49 = arith.addf %45, %48 : vector<8x128xf32>
    %c13 = arith.constant 13 : index
    %50 = memref.load %arg1[%c13] : memref<128xf32, #tpu.memory_space<smem>>
    %51 = vector.broadcast %50 : f32 to vector<8x128xf32>
    %52 = arith.addf %49, %51 : vector<8x128xf32>
    %cst_8 = arith.constant 0.00999999977 : f32
    %53 = vector.broadcast %cst_8 : f32 to vector<8x128xf32>
    %54 = arith.mulf %53, %52 : vector<8x128xf32>
    %55 = arith.maximumf %52, %54 : vector<8x128xf32>
    %c8 = arith.constant 8 : index
    %56 = memref.load %arg1[%c8] : memref<128xf32, #tpu.memory_space<smem>>
    %57 = vector.broadcast %56 : f32 to vector<8x128xf32>
    %58 = arith.mulf %1, %57 : vector<8x128xf32>
    %c9 = arith.constant 9 : index
    %59 = memref.load %arg1[%c9] : memref<128xf32, #tpu.memory_space<smem>>
    %60 = vector.broadcast %59 : f32 to vector<8x128xf32>
    %61 = arith.mulf %3, %60 : vector<8x128xf32>
    %62 = arith.addf %58, %61 : vector<8x128xf32>
    %c14 = arith.constant 14 : index
    %63 = memref.load %arg1[%c14] : memref<128xf32, #tpu.memory_space<smem>>
    %64 = vector.broadcast %63 : f32 to vector<8x128xf32>
    %65 = arith.addf %62, %64 : vector<8x128xf32>
    %cst_9 = arith.constant 0.00999999977 : f32
    %66 = vector.broadcast %cst_9 : f32 to vector<8x128xf32>
    %67 = arith.mulf %66, %65 : vector<8x128xf32>
    %68 = arith.maximumf %65, %67 : vector<8x128xf32>
    %c15 = arith.constant 15 : index
    %69 = memref.load %arg1[%c15] : memref<128xf32, #tpu.memory_space<smem>>
    %70 = vector.broadcast %69 : f32 to vector<8x128xf32>
    %71 = arith.mulf %16, %70 : vector<8x128xf32>
    %c16 = arith.constant 16 : index
    %72 = memref.load %arg1[%c16] : memref<128xf32, #tpu.memory_space<smem>>
    %73 = vector.broadcast %72 : f32 to vector<8x128xf32>
    %74 = arith.mulf %29, %73 : vector<8x128xf32>
    %75 = arith.addf %71, %74 : vector<8x128xf32>
    %c17 = arith.constant 17 : index
    %76 = memref.load %arg1[%c17] : memref<128xf32, #tpu.memory_space<smem>>
    %77 = vector.broadcast %76 : f32 to vector<8x128xf32>
    %78 = arith.mulf %42, %77 : vector<8x128xf32>
    %79 = arith.addf %75, %78 : vector<8x128xf32>
    %c18 = arith.constant 18 : index
    %80 = memref.load %arg1[%c18] : memref<128xf32, #tpu.memory_space<smem>>
    %81 = vector.broadcast %80 : f32 to vector<8x128xf32>
    %82 = arith.mulf %55, %81 : vector<8x128xf32>
    %83 = arith.addf %79, %82 : vector<8x128xf32>
    %c19 = arith.constant 19 : index
    %84 = memref.load %arg1[%c19] : memref<128xf32, #tpu.memory_space<smem>>
    %85 = vector.broadcast %84 : f32 to vector<8x128xf32>
    %86 = arith.mulf %68, %85 : vector<8x128xf32>
    %87 = arith.addf %83, %86 : vector<8x128xf32>
    %c40 = arith.constant 40 : index
    %88 = memref.load %arg1[%c40] : memref<128xf32, #tpu.memory_space<smem>>
    %89 = vector.broadcast %88 : f32 to vector<8x128xf32>
    %90 = arith.addf %87, %89 : vector<8x128xf32>
    %cst_10 = arith.constant 0.00999999977 : f32
    %91 = vector.broadcast %cst_10 : f32 to vector<8x128xf32>
    %92 = arith.mulf %91, %90 : vector<8x128xf32>
    %93 = arith.maximumf %90, %92 : vector<8x128xf32>
    %c20 = arith.constant 20 : index
    %94 = memref.load %arg1[%c20] : memref<128xf32, #tpu.memory_space<smem>>
    %95 = vector.broadcast %94 : f32 to vector<8x128xf32>
    %96 = arith.mulf %16, %95 : vector<8x128xf32>
    %c21 = arith.constant 21 : index
    %97 = memref.load %arg1[%c21] : memref<128xf32, #tpu.memory_space<smem>>
    %98 = vector.broadcast %97 : f32 to vector<8x128xf32>
    %99 = arith.mulf %29, %98 : vector<8x128xf32>
    %100 = arith.addf %96, %99 : vector<8x128xf32>
    %c22 = arith.constant 22 : index
    %101 = memref.load %arg1[%c22] : memref<128xf32, #tpu.memory_space<smem>>
    %102 = vector.broadcast %101 : f32 to vector<8x128xf32>
    %103 = arith.mulf %42, %102 : vector<8x128xf32>
    %104 = arith.addf %100, %103 : vector<8x128xf32>
    %c23 = arith.constant 23 : index
    %105 = memref.load %arg1[%c23] : memref<128xf32, #tpu.memory_space<smem>>
    %106 = vector.broadcast %105 : f32 to vector<8x128xf32>
    %107 = arith.mulf %55, %106 : vector<8x128xf32>
    %108 = arith.addf %104, %107 : vector<8x128xf32>
    %c24 = arith.constant 24 : index
    %109 = memref.load %arg1[%c24] : memref<128xf32, #tpu.memory_space<smem>>
    %110 = vector.broadcast %109 : f32 to vector<8x128xf32>
    %111 = arith.mulf %68, %110 : vector<8x128xf32>
    %112 = arith.addf %108, %111 : vector<8x128xf32>
    %c41 = arith.constant 41 : index
    %113 = memref.load %arg1[%c41] : memref<128xf32, #tpu.memory_space<smem>>
    %114 = vector.broadcast %113 : f32 to vector<8x128xf32>
    %115 = arith.addf %112, %114 : vector<8x128xf32>
    %cst_11 = arith.constant 0.00999999977 : f32
    %116 = vector.broadcast %cst_11 : f32 to vector<8x128xf32>
    %117 = arith.mulf %116, %115 : vector<8x128xf32>
    %118 = arith.maximumf %115, %117 : vector<8x128xf32>
    %c25 = arith.constant 25 : index
    %119 = memref.load %arg1[%c25] : memref<128xf32, #tpu.memory_space<smem>>
    %120 = vector.broadcast %119 : f32 to vector<8x128xf32>
    %121 = arith.mulf %16, %120 : vector<8x128xf32>
    %c26 = arith.constant 26 : index
    %122 = memref.load %arg1[%c26] : memref<128xf32, #tpu.memory_space<smem>>
    %123 = vector.broadcast %122 : f32 to vector<8x128xf32>
    %124 = arith.mulf %29, %123 : vector<8x128xf32>
    %125 = arith.addf %121, %124 : vector<8x128xf32>
    %c27 = arith.constant 27 : index
    %126 = memref.load %arg1[%c27] : memref<128xf32, #tpu.memory_space<smem>>
    %127 = vector.broadcast %126 : f32 to vector<8x128xf32>
    %128 = arith.mulf %42, %127 : vector<8x128xf32>
    %129 = arith.addf %125, %128 : vector<8x128xf32>
    %c28 = arith.constant 28 : index
    %130 = memref.load %arg1[%c28] : memref<128xf32, #tpu.memory_space<smem>>
    %131 = vector.broadcast %130 : f32 to vector<8x128xf32>
    %132 = arith.mulf %55, %131 : vector<8x128xf32>
    %133 = arith.addf %129, %132 : vector<8x128xf32>
    %c29 = arith.constant 29 : index
    %134 = memref.load %arg1[%c29] : memref<128xf32, #tpu.memory_space<smem>>
    %135 = vector.broadcast %134 : f32 to vector<8x128xf32>
    %136 = arith.mulf %68, %135 : vector<8x128xf32>
    %137 = arith.addf %133, %136 : vector<8x128xf32>
    %c42 = arith.constant 42 : index
    %138 = memref.load %arg1[%c42] : memref<128xf32, #tpu.memory_space<smem>>
    %139 = vector.broadcast %138 : f32 to vector<8x128xf32>
    %140 = arith.addf %137, %139 : vector<8x128xf32>
    %cst_12 = arith.constant 0.00999999977 : f32
    %141 = vector.broadcast %cst_12 : f32 to vector<8x128xf32>
    %142 = arith.mulf %141, %140 : vector<8x128xf32>
    %143 = arith.maximumf %140, %142 : vector<8x128xf32>
    %c30 = arith.constant 30 : index
    %144 = memref.load %arg1[%c30] : memref<128xf32, #tpu.memory_space<smem>>
    %145 = vector.broadcast %144 : f32 to vector<8x128xf32>
    %146 = arith.mulf %16, %145 : vector<8x128xf32>
    %c31 = arith.constant 31 : index
    %147 = memref.load %arg1[%c31] : memref<128xf32, #tpu.memory_space<smem>>
    %148 = vector.broadcast %147 : f32 to vector<8x128xf32>
    %149 = arith.mulf %29, %148 : vector<8x128xf32>
    %150 = arith.addf %146, %149 : vector<8x128xf32>
    %c32 = arith.constant 32 : index
    %151 = memref.load %arg1[%c32] : memref<128xf32, #tpu.memory_space<smem>>
    %152 = vector.broadcast %151 : f32 to vector<8x128xf32>
    %153 = arith.mulf %42, %152 : vector<8x128xf32>
    %154 = arith.addf %150, %153 : vector<8x128xf32>
    %c33 = arith.constant 33 : index
    %155 = memref.load %arg1[%c33] : memref<128xf32, #tpu.memory_space<smem>>
    %156 = vector.broadcast %155 : f32 to vector<8x128xf32>
    %157 = arith.mulf %55, %156 : vector<8x128xf32>
    %158 = arith.addf %154, %157 : vector<8x128xf32>
    %c34 = arith.constant 34 : index
    %159 = memref.load %arg1[%c34] : memref<128xf32, #tpu.memory_space<smem>>
    %160 = vector.broadcast %159 : f32 to vector<8x128xf32>
    %161 = arith.mulf %68, %160 : vector<8x128xf32>
    %162 = arith.addf %158, %161 : vector<8x128xf32>
    %c43 = arith.constant 43 : index
    %163 = memref.load %arg1[%c43] : memref<128xf32, #tpu.memory_space<smem>>
    %164 = vector.broadcast %163 : f32 to vector<8x128xf32>
    %165 = arith.addf %162, %164 : vector<8x128xf32>
    %cst_13 = arith.constant 0.00999999977 : f32
    %166 = vector.broadcast %cst_13 : f32 to vector<8x128xf32>
    %167 = arith.mulf %166, %165 : vector<8x128xf32>
    %168 = arith.maximumf %165, %167 : vector<8x128xf32>
    %c35 = arith.constant 35 : index
    %169 = memref.load %arg1[%c35] : memref<128xf32, #tpu.memory_space<smem>>
    %170 = vector.broadcast %169 : f32 to vector<8x128xf32>
    %171 = arith.mulf %16, %170 : vector<8x128xf32>
    %c36 = arith.constant 36 : index
    %172 = memref.load %arg1[%c36] : memref<128xf32, #tpu.memory_space<smem>>
    %173 = vector.broadcast %172 : f32 to vector<8x128xf32>
    %174 = arith.mulf %29, %173 : vector<8x128xf32>
    %175 = arith.addf %171, %174 : vector<8x128xf32>
    %c37 = arith.constant 37 : index
    %176 = memref.load %arg1[%c37] : memref<128xf32, #tpu.memory_space<smem>>
    %177 = vector.broadcast %176 : f32 to vector<8x128xf32>
    %178 = arith.mulf %42, %177 : vector<8x128xf32>
    %179 = arith.addf %175, %178 : vector<8x128xf32>
    %c38 = arith.constant 38 : index
    %180 = memref.load %arg1[%c38] : memref<128xf32, #tpu.memory_space<smem>>
    %181 = vector.broadcast %180 : f32 to vector<8x128xf32>
    %182 = arith.mulf %55, %181 : vector<8x128xf32>
    %183 = arith.addf %179, %182 : vector<8x128xf32>
    %c39 = arith.constant 39 : index
    %184 = memref.load %arg1[%c39] : memref<128xf32, #tpu.memory_space<smem>>
    %185 = vector.broadcast %184 : f32 to vector<8x128xf32>
    %186 = arith.mulf %68, %185 : vector<8x128xf32>
    %187 = arith.addf %183, %186 : vector<8x128xf32>
    %c44 = arith.constant 44 : index
    %188 = memref.load %arg1[%c44] : memref<128xf32, #tpu.memory_space<smem>>
    %189 = vector.broadcast %188 : f32 to vector<8x128xf32>
    %190 = arith.addf %187, %189 : vector<8x128xf32>
    %cst_14 = arith.constant 0.00999999977 : f32
    %191 = vector.broadcast %cst_14 : f32 to vector<8x128xf32>
    %192 = arith.mulf %191, %190 : vector<8x128xf32>
    %193 = arith.maximumf %190, %192 : vector<8x128xf32>
    %c45 = arith.constant 45 : index
    %194 = memref.load %arg1[%c45] : memref<128xf32, #tpu.memory_space<smem>>
    %195 = vector.broadcast %194 : f32 to vector<8x128xf32>
    %196 = arith.mulf %93, %195 : vector<8x128xf32>
    %c46 = arith.constant 46 : index
    %197 = memref.load %arg1[%c46] : memref<128xf32, #tpu.memory_space<smem>>
    %198 = vector.broadcast %197 : f32 to vector<8x128xf32>
    %199 = arith.mulf %118, %198 : vector<8x128xf32>
    %200 = arith.addf %196, %199 : vector<8x128xf32>
    %c47 = arith.constant 47 : index
    %201 = memref.load %arg1[%c47] : memref<128xf32, #tpu.memory_space<smem>>
    %202 = vector.broadcast %201 : f32 to vector<8x128xf32>
    %203 = arith.mulf %143, %202 : vector<8x128xf32>
    %204 = arith.addf %200, %203 : vector<8x128xf32>
    %c48 = arith.constant 48 : index
    %205 = memref.load %arg1[%c48] : memref<128xf32, #tpu.memory_space<smem>>
    %206 = vector.broadcast %205 : f32 to vector<8x128xf32>
    %207 = arith.mulf %168, %206 : vector<8x128xf32>
    %208 = arith.addf %204, %207 : vector<8x128xf32>
    %c49 = arith.constant 49 : index
    %209 = memref.load %arg1[%c49] : memref<128xf32, #tpu.memory_space<smem>>
    %210 = vector.broadcast %209 : f32 to vector<8x128xf32>
    %211 = arith.mulf %193, %210 : vector<8x128xf32>
    %212 = arith.addf %208, %211 : vector<8x128xf32>
    %c70 = arith.constant 70 : index
    %213 = memref.load %arg1[%c70] : memref<128xf32, #tpu.memory_space<smem>>
    %214 = vector.broadcast %213 : f32 to vector<8x128xf32>
    %215 = arith.addf %212, %214 : vector<8x128xf32>
    %cst_15 = arith.constant 0.00999999977 : f32
    %216 = vector.broadcast %cst_15 : f32 to vector<8x128xf32>
    %217 = arith.mulf %216, %215 : vector<8x128xf32>
    %218 = arith.maximumf %215, %217 : vector<8x128xf32>
    %c50 = arith.constant 50 : index
    %219 = memref.load %arg1[%c50] : memref<128xf32, #tpu.memory_space<smem>>
    %220 = vector.broadcast %219 : f32 to vector<8x128xf32>
    %221 = arith.mulf %93, %220 : vector<8x128xf32>
    %c51 = arith.constant 51 : index
    %222 = memref.load %arg1[%c51] : memref<128xf32, #tpu.memory_space<smem>>
    %223 = vector.broadcast %222 : f32 to vector<8x128xf32>
    %224 = arith.mulf %118, %223 : vector<8x128xf32>
    %225 = arith.addf %221, %224 : vector<8x128xf32>
    %c52 = arith.constant 52 : index
    %226 = memref.load %arg1[%c52] : memref<128xf32, #tpu.memory_space<smem>>
    %227 = vector.broadcast %226 : f32 to vector<8x128xf32>
    %228 = arith.mulf %143, %227 : vector<8x128xf32>
    %229 = arith.addf %225, %228 : vector<8x128xf32>
    %c53 = arith.constant 53 : index
    %230 = memref.load %arg1[%c53] : memref<128xf32, #tpu.memory_space<smem>>
    %231 = vector.broadcast %230 : f32 to vector<8x128xf32>
    %232 = arith.mulf %168, %231 : vector<8x128xf32>
    %233 = arith.addf %229, %232 : vector<8x128xf32>
    %c54 = arith.constant 54 : index
    %234 = memref.load %arg1[%c54] : memref<128xf32, #tpu.memory_space<smem>>
    %235 = vector.broadcast %234 : f32 to vector<8x128xf32>
    %236 = arith.mulf %193, %235 : vector<8x128xf32>
    %237 = arith.addf %233, %236 : vector<8x128xf32>
    %c71 = arith.constant 71 : index
    %238 = memref.load %arg1[%c71] : memref<128xf32, #tpu.memory_space<smem>>
    %239 = vector.broadcast %238 : f32 to vector<8x128xf32>
    %240 = arith.addf %237, %239 : vector<8x128xf32>
    %cst_16 = arith.constant 0.00999999977 : f32
    %241 = vector.broadcast %cst_16 : f32 to vector<8x128xf32>
    %242 = arith.mulf %241, %240 : vector<8x128xf32>
    %243 = arith.maximumf %240, %242 : vector<8x128xf32>
    %c55 = arith.constant 55 : index
    %244 = memref.load %arg1[%c55] : memref<128xf32, #tpu.memory_space<smem>>
    %245 = vector.broadcast %244 : f32 to vector<8x128xf32>
    %246 = arith.mulf %93, %245 : vector<8x128xf32>
    %c56 = arith.constant 56 : index
    %247 = memref.load %arg1[%c56] : memref<128xf32, #tpu.memory_space<smem>>
    %248 = vector.broadcast %247 : f32 to vector<8x128xf32>
    %249 = arith.mulf %118, %248 : vector<8x128xf32>
    %250 = arith.addf %246, %249 : vector<8x128xf32>
    %c57 = arith.constant 57 : index
    %251 = memref.load %arg1[%c57] : memref<128xf32, #tpu.memory_space<smem>>
    %252 = vector.broadcast %251 : f32 to vector<8x128xf32>
    %253 = arith.mulf %143, %252 : vector<8x128xf32>
    %254 = arith.addf %250, %253 : vector<8x128xf32>
    %c58 = arith.constant 58 : index
    %255 = memref.load %arg1[%c58] : memref<128xf32, #tpu.memory_space<smem>>
    %256 = vector.broadcast %255 : f32 to vector<8x128xf32>
    %257 = arith.mulf %168, %256 : vector<8x128xf32>
    %258 = arith.addf %254, %257 : vector<8x128xf32>
    %c59 = arith.constant 59 : index
    %259 = memref.load %arg1[%c59] : memref<128xf32, #tpu.memory_space<smem>>
    %260 = vector.broadcast %259 : f32 to vector<8x128xf32>
    %261 = arith.mulf %193, %260 : vector<8x128xf32>
    %262 = arith.addf %258, %261 : vector<8x128xf32>
    %c72 = arith.constant 72 : index
    %263 = memref.load %arg1[%c72] : memref<128xf32, #tpu.memory_space<smem>>
    %264 = vector.broadcast %263 : f32 to vector<8x128xf32>
    %265 = arith.addf %262, %264 : vector<8x128xf32>
    %cst_17 = arith.constant 0.00999999977 : f32
    %266 = vector.broadcast %cst_17 : f32 to vector<8x128xf32>
    %267 = arith.mulf %266, %265 : vector<8x128xf32>
    %268 = arith.maximumf %265, %267 : vector<8x128xf32>
    %c60 = arith.constant 60 : index
    %269 = memref.load %arg1[%c60] : memref<128xf32, #tpu.memory_space<smem>>
    %270 = vector.broadcast %269 : f32 to vector<8x128xf32>
    %271 = arith.mulf %93, %270 : vector<8x128xf32>
    %c61 = arith.constant 61 : index
    %272 = memref.load %arg1[%c61] : memref<128xf32, #tpu.memory_space<smem>>
    %273 = vector.broadcast %272 : f32 to vector<8x128xf32>
    %274 = arith.mulf %118, %273 : vector<8x128xf32>
    %275 = arith.addf %271, %274 : vector<8x128xf32>
    %c62 = arith.constant 62 : index
    %276 = memref.load %arg1[%c62] : memref<128xf32, #tpu.memory_space<smem>>
    %277 = vector.broadcast %276 : f32 to vector<8x128xf32>
    %278 = arith.mulf %143, %277 : vector<8x128xf32>
    %279 = arith.addf %275, %278 : vector<8x128xf32>
    %c63 = arith.constant 63 : index
    %280 = memref.load %arg1[%c63] : memref<128xf32, #tpu.memory_space<smem>>
    %281 = vector.broadcast %280 : f32 to vector<8x128xf32>
    %282 = arith.mulf %168, %281 : vector<8x128xf32>
    %283 = arith.addf %279, %282 : vector<8x128xf32>
    %c64 = arith.constant 64 : index
    %284 = memref.load %arg1[%c64] : memref<128xf32, #tpu.memory_space<smem>>
    %285 = vector.broadcast %284 : f32 to vector<8x128xf32>
    %286 = arith.mulf %193, %285 : vector<8x128xf32>
    %287 = arith.addf %283, %286 : vector<8x128xf32>
    %c73 = arith.constant 73 : index
    %288 = memref.load %arg1[%c73] : memref<128xf32, #tpu.memory_space<smem>>
    %289 = vector.broadcast %288 : f32 to vector<8x128xf32>
    %290 = arith.addf %287, %289 : vector<8x128xf32>
    %cst_18 = arith.constant 0.00999999977 : f32
    %291 = vector.broadcast %cst_18 : f32 to vector<8x128xf32>
    %292 = arith.mulf %291, %290 : vector<8x128xf32>
    %293 = arith.maximumf %290, %292 : vector<8x128xf32>
    %c65 = arith.constant 65 : index
    %294 = memref.load %arg1[%c65] : memref<128xf32, #tpu.memory_space<smem>>
    %295 = vector.broadcast %294 : f32 to vector<8x128xf32>
    %296 = arith.mulf %93, %295 : vector<8x128xf32>
    %c66 = arith.constant 66 : index
    %297 = memref.load %arg1[%c66] : memref<128xf32, #tpu.memory_space<smem>>
    %298 = vector.broadcast %297 : f32 to vector<8x128xf32>
    %299 = arith.mulf %118, %298 : vector<8x128xf32>
    %300 = arith.addf %296, %299 : vector<8x128xf32>
    %c67 = arith.constant 67 : index
    %301 = memref.load %arg1[%c67] : memref<128xf32, #tpu.memory_space<smem>>
    %302 = vector.broadcast %301 : f32 to vector<8x128xf32>
    %303 = arith.mulf %143, %302 : vector<8x128xf32>
    %304 = arith.addf %300, %303 : vector<8x128xf32>
    %c68 = arith.constant 68 : index
    %305 = memref.load %arg1[%c68] : memref<128xf32, #tpu.memory_space<smem>>
    %306 = vector.broadcast %305 : f32 to vector<8x128xf32>
    %307 = arith.mulf %168, %306 : vector<8x128xf32>
    %308 = arith.addf %304, %307 : vector<8x128xf32>
    %c69 = arith.constant 69 : index
    %309 = memref.load %arg1[%c69] : memref<128xf32, #tpu.memory_space<smem>>
    %310 = vector.broadcast %309 : f32 to vector<8x128xf32>
    %311 = arith.mulf %193, %310 : vector<8x128xf32>
    %312 = arith.addf %308, %311 : vector<8x128xf32>
    %c74 = arith.constant 74 : index
    %313 = memref.load %arg1[%c74] : memref<128xf32, #tpu.memory_space<smem>>
    %314 = vector.broadcast %313 : f32 to vector<8x128xf32>
    %315 = arith.addf %312, %314 : vector<8x128xf32>
    %cst_19 = arith.constant 0.00999999977 : f32
    %316 = vector.broadcast %cst_19 : f32 to vector<8x128xf32>
    %317 = arith.mulf %316, %315 : vector<8x128xf32>
    %318 = arith.maximumf %315, %317 : vector<8x128xf32>
    %c75 = arith.constant 75 : index
    %319 = memref.load %arg1[%c75] : memref<128xf32, #tpu.memory_space<smem>>
    %320 = vector.broadcast %319 : f32 to vector<8x128xf32>
    %321 = arith.mulf %218, %320 : vector<8x128xf32>
    %c76 = arith.constant 76 : index
    %322 = memref.load %arg1[%c76] : memref<128xf32, #tpu.memory_space<smem>>
    %323 = vector.broadcast %322 : f32 to vector<8x128xf32>
    %324 = arith.mulf %243, %323 : vector<8x128xf32>
    %325 = arith.addf %321, %324 : vector<8x128xf32>
    %c77 = arith.constant 77 : index
    %326 = memref.load %arg1[%c77] : memref<128xf32, #tpu.memory_space<smem>>
    %327 = vector.broadcast %326 : f32 to vector<8x128xf32>
    %328 = arith.mulf %268, %327 : vector<8x128xf32>
    %329 = arith.addf %325, %328 : vector<8x128xf32>
    %c78 = arith.constant 78 : index
    %330 = memref.load %arg1[%c78] : memref<128xf32, #tpu.memory_space<smem>>
    %331 = vector.broadcast %330 : f32 to vector<8x128xf32>
    %332 = arith.mulf %293, %331 : vector<8x128xf32>
    %333 = arith.addf %329, %332 : vector<8x128xf32>
    %c79 = arith.constant 79 : index
    %334 = memref.load %arg1[%c79] : memref<128xf32, #tpu.memory_space<smem>>
    %335 = vector.broadcast %334 : f32 to vector<8x128xf32>
    %336 = arith.mulf %318, %335 : vector<8x128xf32>
    %337 = arith.addf %333, %336 : vector<8x128xf32>
    %c80 = arith.constant 80 : index
    %338 = memref.load %arg1[%c80] : memref<128xf32, #tpu.memory_space<smem>>
    %339 = vector.broadcast %338 : f32 to vector<8x128xf32>
    %340 = arith.addf %337, %339 : vector<8x128xf32>
    %341 = arith.negf %340 : vector<8x128xf32>
    %342 = math.exp %341 : vector<8x128xf32>
    %cst_20 = arith.constant 1.000000e+00 : f32
    %343 = vector.broadcast %cst_20 : f32 to vector<8x128xf32>
    %344 = arith.addf %343, %342 : vector<8x128xf32>
    %345 = arith.divf %343, %344 : vector<8x128xf32>
    %c0_21 = arith.constant 0 : index
    %c0_22 = arith.constant 0 : index
    %346 = vector.load %arg3[%c0_21, %c0_22] : memref<8x128xf32, #tpu.memory_space<vmem>>, vector<8x128xf32>
    tpu.vector_store %arg3[%c0_21, %c0_22], %345 {strides = array<i32>} : memref<8x128xf32, #tpu.memory_space<vmem>>, vector<8x128xf32>,
    return
  }
  func.func @transform_0(%arg0: i32) -> i32 {
    %c0_i32 = arith.constant 0 : i32
    %c0_i32_0 = arith.constant 0 : i32
    return %c0_i32 : i32
  }
  func.func @transform_1(%arg0: i32) -> (i32, i32, i32) {
    %c0_i32 = arith.constant 0 : i32
    %c0_i32_0 = arith.constant 0 : i32
    %c0_i32_1 = arith.constant 0 : i32
    return %c0_i32, %c0_i32_0, %arg0 : i32, i32, i32
  }
  func.func @transform_2(%arg0: i32) -> (i32, i32) {
    %c0_i32 = arith.constant 0 : i32
    %c0_i32_0 = arith.constant 0 : i32
    return %c0_i32, %arg0 : i32, i32
  }
}

</mosaic_0001>

<llo_original>
// kernel: forward.1
$region0: #{forward.1}
  #allocation0 [shape = 'u32[]', space=smem, size = 0x4, offset = 0x4, fixed_abs, tag = 'smem constant byte address 0x4 - core index']
  #allocation1 [shape = 'u32[144,128]{1,0:T(1,128)}', space=vmem, size = 0x12000, scoped, tag = 'internal scratch']
  %s0 = inlined_call_operand.vmem [shape: f32[128], index: 0, kind: input, shape index: {}]
  %s1 = inlined_call_operand.vmem [shape: f32[2,8,128], index: 1, kind: input, shape index: {}]
  %s2 = inlined_call_operand.vmem [shape: f32[8,128], index: 2, kind: output, shape index: {}]
  %s3 = sld [smem:[#allocation0]]
  $region22: #{forward.1} parent=0
    _
  %s5 = ssub.s32 1, %s3
  %s6 = scalar_select 0, %s5, %s3
  $region1: #{forward.1} parent=0
    #allocation2 [shape = 'u8[512]{0}', space=smem, size = 0x200, scoped, tag = 'input window, operand 0, single buffered']
    #allocation3 [shape = 's32[1]{0}', space=sflag, size = 0x4, scoped, tag = 'scoped memory for forward.1']
    %7 = vsyncpa [#allocation3], 0
    // Predicated region
    $region2: #{forward.1} parent=1 // pred_check
      _
    $region3: #{forward.1} parent=1 // pred_check_branch
      %9 = sbr.rel (0) target = $region5
    $region4: #{forward.1} parent=1 // pred_region
      %s11 = ssub.s32 16, 16
      %12 = vsyncadd [#allocation3], %s11
      %s14 = sshll.u32 %s0, 4
      %s15 = int_to_ptr.vmem [resolvable:$true] %s14
      %17 = dma.vmem_to_smem %s15, 16, [#allocation2], [#allocation3]
    $region5: #{forward.1} parent=1 // pred_fallthru
      _
    // Predicated region
    $region6: #{forward.1} parent=1 // pred_check
      _
    $region7: #{forward.1} parent=1 // pred_check_branch
      %19 = sbr.rel (0) target = $region9
    $region8: #{forward.1} parent=1 // pred_region
      _
    $region9: #{forward.1} parent=1 // pred_fallthru
      _
    // Predicated region
    $region10: #{forward.1} parent=1 // pred_check
      _
    $region11: #{forward.1} parent=1 // pred_check_branch
      %21 = sbr.rel (0) target = $region13
    $region12: #{forward.1} parent=1 // pred_region
      %22 = dma.done [#allocation3], 16
    $region13: #{forward.1} parent=1 // pred_fallthru
      _
    %23 = sfence
    %v24 = vld [vmem:[%s1] sm:$0xff]
    %s25 = scalar_lea.vmem %s1, 8
    %v26 = vld [vmem:[%s25] sm:$0xff]
    %s27 = sld [smem:[#allocation2]]
    %v28 = vstv %s27
    %v29 = vmul.f32 %v24, %v28
    %s30 = sld [smem:[#allocation2 + $0x1]]
    %v31 = vstv %s30
    %v32 = vmul.f32 %v26, %v31
    %v33 = vadd.f32 %v29, %v32
    %s34 = sld [smem:[#allocation2 + $0xa]]
    %v35 = vstv %s34
    %v36 = vadd.f32 %v33, %v35
    %v37 = vmul.f32 %v36, 0.01
    %v38 = vmax.f32 %v36, %v37
    %s39 = sld [smem:[#allocation2 + $0x2]]
    %v40 = vstv %s39
    %v41 = vmul.f32 %v24, %v40
    %s42 = sld [smem:[#allocation2 + $0x3]]
    %v43 = vstv %s42
    %v44 = vmul.f32 %v26, %v43
    %v45 = vadd.f32 %v41, %v44
    %s46 = sld [smem:[#allocation2 + $0xb]]
    %v47 = vstv %s46
    %v48 = vadd.f32 %v45, %v47
    %v49 = vmul.f32 %v48, 0.01
    %v50 = vmax.f32 %v48, %v49
    %s51 = sld [smem:[#allocation2 + $0x4]]
    %v52 = vstv %s51
    %v53 = vmul.f32 %v24, %v52
    %s54 = sld [smem:[#allocation2 + $0x5]]
    %v55 = vstv %s54
    %v56 = vmul.f32 %v26, %v55
    %v57 = vadd.f32 %v53, %v56
    %s58 = sld [smem:[#allocation2 + $0xc]]
    %v59 = vstv %s58
    %v60 = vadd.f32 %v57, %v59
    %v61 = vmul.f32 %v60, 0.01
    %v62 = vmax.f32 %v60, %v61
    %s63 = sld [smem:[#allocation2 + $0x6]]
    %v64 = vstv %s63
    %v65 = vmul.f32 %v24, %v64
    %s66 = sld [smem:[#allocation2 + $0x7]]
    %v67 = vstv %s66
    %v68 = vmul.f32 %v26, %v67
    %v69 = vadd.f32 %v65, %v68
    %s70 = sld [smem:[#allocation2 + $0xd]]
    %v71 = vstv %s70
    %v72 = vadd.f32 %v69, %v71
    %v73 = vmul.f32 %v72, 0.01
    %v74 = vmax.f32 %v72, %v73
    %s75 = sld [smem:[#allocation2 + $0x8]]
    %v76 = vstv %s75
    %v77 = vmul.f32 %v24, %v76
    %s78 = sld [smem:[#allocation2 + $0x9]]
    %v79 = vstv %s78
    %v80 = vmul.f32 %v26, %v79
    %v81 = vadd.f32 %v77, %v80
    %s82 = sld [smem:[#allocation2 + $0xe]]
    %v83 = vstv %s82
    %v84 = vadd.f32 %v81, %v83
    %v85 = vmul.f32 %v84, 0.01
    %v86 = vmax.f32 %v84, %v85
    %s87 = sld [smem:[#allocation2 + $0xf]]
    %v88 = vstv %s87
    %v89 = vmul.f32 %v38, %v88
    %s90 = sld [smem:[#allocation2 + $0x10]]
    %v91 = vstv %s90
    %v92 = vmul.f32 %v50, %v91
    %v93 = vadd.f32 %v89, %v92
    %s94 = sld [smem:[#allocation2 + $0x11]]
    %v95 = vstv %s94
    %v96 = vmul.f32 %v62, %v95
    %v97 = vadd.f32 %v93, %v96
    %s98 = sld [smem:[#allocation2 + $0x12]]
    %v99 = vstv %s98
    %v100 = vmul.f32 %v74, %v99
    %v101 = vadd.f32 %v97, %v100
    %s102 = sld [smem:[#allocation2 + $0x13]]
    %v103 = vstv %s102
    %v104 = vmul.f32 %v86, %v103
    %v105 = vadd.f32 %v101, %v104
    %s106 = sld [smem:[#allocation2 + $0x28]]
    %v107 = vstv %s106
    %v108 = vadd.f32 %v105, %v107
    %v109 = vmul.f32 %v108, 0.01
    %v110 = vmax.f32 %v108, %v109
    %s111 = sld [smem:[#allocation2 + $0x14]]
    %v112 = vstv %s111
    %v113 = vmul.f32 %v38, %v112
    %s114 = sld [smem:[#allocation2 + $0x15]]
    %v115 = vstv %s114
    %v116 = vmul.f32 %v50, %v115
    %v117 = vadd.f32 %v113, %v116
    %s118 = sld [smem:[#allocation2 + $0x16]]
    %v119 = vstv %s118
    %v120 = vmul.f32 %v62, %v119
    %v121 = vadd.f32 %v117, %v120
    %s122 = sld [smem:[#allocation2 + $0x17]]
    %v123 = vstv %s122
    %v124 = vmul.f32 %v74, %v123
    %v125 = vadd.f32 %v121, %v124
    %s126 = sld [smem:[#allocation2 + $0x18]]
    %v127 = vstv %s126
    %v128 = vmul.f32 %v86, %v127
    %v129 = vadd.f32 %v125, %v128
    %s130 = sld [smem:[#allocation2 + $0x29]]
    %v131 = vstv %s130
    %v132 = vadd.f32 %v129, %v131
    %v133 = vmul.f32 %v132, 0.01
    %v134 = vmax.f32 %v132, %v133
    %s135 = sld [smem:[#allocation2 + $0x19]]
    %v136 = vstv %s135
    %v137 = vmul.f32 %v38, %v136
    %s138 = sld [smem:[#allocation2 + $0x1a]]
    %v139 = vstv %s138
    %v140 = vmul.f32 %v50, %v139
    %v141 = vadd.f32 %v137, %v140
    %s142 = sld [smem:[#allocation2 + $0x1b]]
    %v143 = vstv %s142
    %v144 = vmul.f32 %v62, %v143
    %v145 = vadd.f32 %v141, %v144
    %s146 = sld [smem:[#allocation2 + $0x1c]]
    %v147 = vstv %s146
    %v148 = vmul.f32 %v74, %v147
    %v149 = vadd.f32 %v145, %v148
    %s150 = sld [smem:[#allocation2 + $0x1d]]
    %v151 = vstv %s150
    %v152 = vmul.f32 %v86, %v151
    %v153 = vadd.f32 %v149, %v152
    %s154 = sld [smem:[#allocation2 + $0x2a]]
    %v155 = vstv %s154
    %v156 = vadd.f32 %v153, %v155
    %v157 = vmul.f32 %v156, 0.01
    %v158 = vmax.f32 %v156, %v157
    %s159 = sld [smem:[#allocation2 + $0x1e]]
    %v160 = vstv %s159
    %v161 = vmul.f32 %v38, %v160
    %s162 = sld [smem:[#allocation2 + $0x1f]]
    %v163 = vstv %s162
    %v164 = vmul.f32 %v50, %v163
    %v165 = vadd.f32 %v161, %v164
    %s166 = sld [smem:[#allocation2 + $0x20]]
    %v167 = vstv %s166
    %v168 = vmul.f32 %v62, %v167
    %v169 = vadd.f32 %v165, %v168
    %s170 = sld [smem:[#allocation2 + $0x21]]
    %v171 = vstv %s170
    %v172 = vmul.f32 %v74, %v171
    %v173 = vadd.f32 %v169, %v172
    %s174 = sld [smem:[#allocation2 + $0x22]]
    %v175 = vstv %s174
    %v176 = vmul.f32 %v86, %v175
    %v177 = vadd.f32 %v173, %v176
    %s178 = sld [smem:[#allocation2 + $0x2b]]
    %v179 = vstv %s178
    %v180 = vadd.f32 %v177, %v179
    %v181 = vmul.f32 %v180, 0.01
    %v182 = vmax.f32 %v180, %v181
    %s183 = sld [smem:[#allocation2 + $0x23]]
    %v184 = vstv %s183
    %v185 = vmul.f32 %v38, %v184
    %s186 = sld [smem:[#allocation2 + $0x24]]
    %v187 = vstv %s186
    %v188 = vmul.f32 %v50, %v187
    %v189 = vadd.f32 %v185, %v188
    %s190 = sld [smem:[#allocation2 + $0x25]]
    %v191 = vstv %s190
    %v192 = vmul.f32 %v62, %v191
    %v193 = vadd.f32 %v189, %v192
    %s194 = sld [smem:[#allocation2 + $0x26]]
    %v195 = vstv %s194
    %v196 = vmul.f32 %v74, %v195
    %v197 = vadd.f32 %v193, %v196
    %s198 = sld [smem:[#allocation2 + $0x27]]
    %v199 = vstv %s198
    %v200 = vmul.f32 %v86, %v199
    %v201 = vadd.f32 %v197, %v200
    %s202 = sld [smem:[#allocation2 + $0x2c]]
    %v203 = vstv %s202
    %v204 = vadd.f32 %v201, %v203
    %v205 = vmul.f32 %v204, 0.01
    %v206 = vmax.f32 %v204, %v205
    %s207 = sld [smem:[#allocation2 + $0x2d]]
    %v208 = vstv %s207
    %v209 = vmul.f32 %v110, %v208
    %s210 = sld [smem:[#allocation2 + $0x2e]]
    %v211 = vstv %s210
    %v212 = vmul.f32 %v134, %v211
    %v213 = vadd.f32 %v209, %v212
    %s214 = sld [smem:[#allocation2 + $0x2f]]
    %v215 = vstv %s214
    %v216 = vmul.f32 %v158, %v215
    %v217 = vadd.f32 %v213, %v216
    %s218 = sld [smem:[#allocation2 + $0x30]]
    %v219 = vstv %s218
    %v220 = vmul.f32 %v182, %v219
    %v221 = vadd.f32 %v217, %v220
    %s222 = sld [smem:[#allocation2 + $0x31]]
    %v223 = vstv %s222
    %v224 = vmul.f32 %v206, %v223
    %v225 = vadd.f32 %v221, %v224
    %s226 = sld [smem:[#allocation2 + $0x46]]
    %v227 = vstv %s226
    %v228 = vadd.f32 %v225, %v227
    %v229 = vmul.f32 %v228, 0.01
    %v230 = vmax.f32 %v228, %v229
    %s231 = sld [smem:[#allocation2 + $0x32]]
    %v232 = vstv %s231
    %v233 = vmul.f32 %v110, %v232
    %s234 = sld [smem:[#allocation2 + $0x33]]
    %v235 = vstv %s234
    %v236 = vmul.f32 %v134, %v235
    %v237 = vadd.f32 %v233, %v236
    %s238 = sld [smem:[#allocation2 + $0x34]]
    %v239 = vstv %s238
    %v240 = vmul.f32 %v158, %v239
    %v241 = vadd.f32 %v237, %v240
    %s242 = sld [smem:[#allocation2 + $0x35]]
    %v243 = vstv %s242
    %v244 = vmul.f32 %v182, %v243
    %v245 = vadd.f32 %v241, %v244
    %s246 = sld [smem:[#allocation2 + $0x36]]
    %v247 = vstv %s246
    %v248 = vmul.f32 %v206, %v247
    %v249 = vadd.f32 %v245, %v248
    %s250 = sld [smem:[#allocation2 + $0x47]]
    %v251 = vstv %s250
    %v252 = vadd.f32 %v249, %v251
    %v253 = vmul.f32 %v252, 0.01
    %v254 = vmax.f32 %v252, %v253
    %s255 = sld [smem:[#allocation2 + $0x37]]
    %v256 = vstv %s255
    %v257 = vmul.f32 %v110, %v256
    %s258 = sld [smem:[#allocation2 + $0x38]]
    %v259 = vstv %s258
    %v260 = vmul.f32 %v134, %v259
    %v261 = vadd.f32 %v257, %v260
    %s262 = sld [smem:[#allocation2 + $0x39]]
    %v263 = vstv %s262
    %v264 = vmul.f32 %v158, %v263
    %v265 = vadd.f32 %v261, %v264
    %s266 = sld [smem:[#allocation2 + $0x3a]]
    %v267 = vstv %s266
    %v268 = vmul.f32 %v182, %v267
    %v269 = vadd.f32 %v265, %v268
    %s270 = sld [smem:[#allocation2 + $0x3b]]
    %v271 = vstv %s270
    %v272 = vmul.f32 %v206, %v271
    %v273 = vadd.f32 %v269, %v272
    %s274 = sld [smem:[#allocation2 + $0x48]]
    %v275 = vstv %s274
    %v276 = vadd.f32 %v273, %v275
    %v277 = vmul.f32 %v276, 0.01
    %v278 = vmax.f32 %v276, %v277
    %s279 = sld [smem:[#allocation2 + $0x3c]]
    %v280 = vstv %s279
    %v281 = vmul.f32 %v110, %v280
    %s282 = sld [smem:[#allocation2 + $0x3d]]
    %v283 = vstv %s282
    %v284 = vmul.f32 %v134, %v283
    %v285 = vadd.f32 %v281, %v284
    %s286 = sld [smem:[#allocation2 + $0x3e]]
    %v287 = vstv %s286
    %v288 = vmul.f32 %v158, %v287
    %v289 = vadd.f32 %v285, %v288
    %s290 = sld [smem:[#allocation2 + $0x3f]]
    %v291 = vstv %s290
    %v292 = vmul.f32 %v182, %v291
    %v293 = vadd.f32 %v289, %v292
    %s294 = sld [smem:[#allocation2 + $0x40]]
    %v295 = vstv %s294
    %v296 = vmul.f32 %v206, %v295
    %v297 = vadd.f32 %v293, %v296
    %s298 = sld [smem:[#allocation2 + $0x49]]
    %v299 = vstv %s298
    %v300 = vadd.f32 %v297, %v299
    %v301 = vmul.f32 %v300, 0.01
    %v302 = vmax.f32 %v300, %v301
    %s303 = sld [smem:[#allocation2 + $0x41]]
    %v304 = vstv %s303
    %v305 = vmul.f32 %v110, %v304
    %s306 = sld [smem:[#allocation2 + $0x42]]
    %v307 = vstv %s306
    %v308 = vmul.f32 %v134, %v307
    %v309 = vadd.f32 %v305, %v308
    %s310 = sld [smem:[#allocation2 + $0x43]]
    %v311 = vstv %s310
    %v312 = vmul.f32 %v158, %v311
    %v313 = vadd.f32 %v309, %v312
    %s314 = sld [smem:[#allocation2 + $0x44]]
    %v315 = vstv %s314
    %v316 = vmul.f32 %v182, %v315
    %v317 = vadd.f32 %v313, %v316
    %s318 = sld [smem:[#allocation2 + $0x45]]
    %v319 = vstv %s318
    %v320 = vmul.f32 %v206, %v319
    %v321 = vadd.f32 %v317, %v320
    %s322 = sld [smem:[#allocation2 + $0x4a]]
    %v323 = vstv %s322
    %v324 = vadd.f32 %v321, %v323
    %v325 = vmul.f32 %v324, 0.01
    %v326 = vmax.f32 %v324, %v325
    %s327 = sld [smem:[#allocation2 + $0x4b]]
    %v328 = vstv %s327
    %v329 = vmul.f32 %v230, %v328
    %s330 = sld [smem:[#allocation2 + $0x4c]]
    %v331 = vstv %s330
    %v332 = vmul.f32 %v254, %v331
    %v333 = vadd.f32 %v329, %v332
    %s334 = sld [smem:[#allocation2 + $0x4d]]
    %v335 = vstv %s334
    %v336 = vmul.f32 %v278, %v335
    %v337 = vadd.f32 %v333, %v336
    %s338 = sld [smem:[#allocation2 + $0x4e]]
    %v339 = vstv %s338
    %v340 = vmul.f32 %v302, %v339
    %v341 = vadd.f32 %v337, %v340
    %s342 = sld [smem:[#allocation2 + $0x4f]]
    %v343 = vstv %s342
    %v344 = vmul.f32 %v326, %v343
    %v345 = vadd.f32 %v341, %v344
    %s346 = sld [smem:[#allocation2 + $0x50]]
    %v347 = vstv %s346
    %v348 = vadd.f32 %v345, %v347
    %v349 = vxor.u32 %v348, 2147483648
    %v350 = vmul.f32 %v349, 1.442695
    %v351 = vpow.pop %v350
    %v352 = vadd.f32 %v351, 1.0
    %v353 = vrcp.pop %v352
    %v354 = vmul.f32 1.0, %v353
    %355 = vst [vmem:[%s2] sm:$0xff] %v354
    // Predicated region
    $region14: #{forward.1} parent=1 // pred_check
      _
    $region15: #{forward.1} parent=1 // pred_check_branch
      %357 = sbr.rel (0) target = $region17
    $region16: #{forward.1} parent=1 // pred_region
      _
    $region17: #{forward.1} parent=1 // pred_fallthru
      _
    // Predicated region
    $region18: #{forward.1} parent=1 // pred_check
      _
    $region19: #{forward.1} parent=1 // pred_check_branch
      %359 = sbr.rel (0) target = $region21
    $region20: #{forward.1} parent=1 // pred_region
      _
    $region21: #{forward.1} parent=1 // pred_fallthru
      _
    %360 = vsyncpa [#allocation3], 1

</llo_original>
